<compile_context>
chip_gen: v7x
topology: tpu7x:2x2x1
jax: 0.10.0
libtpu: 0.0.40
codegen_flags: <defaults>
</compile_context>

<pallas_src>
import functools

import jax
import jax.numpy as jnp
from jax.experimental import pallas as pl
from jax.experimental.pallas import tpu as pltpu


def _self_attn_kernel(x_ref, w_ref, b_ref, o_ref, *, g, c, d_k):
    """One block = `g` whole batches = g*c rows.

    x_ref: (g*c, d_m)  [matmul dtype]     w_ref: (d_m, d_k+2) [matmul dtype]
    b_ref: (1, d_k+2)  f32                o_ref: (g*c, d_k)
    """
    rows = g * c

    # Single fused MXU matmul, f32 accumulate:
    #   columns [0:d_k]   -> V projection
    #   column  d_k       -> rowsum(q) / sqrt(d_k)   (scale pre-folded)
    #   column  d_k + 1   -> rowsum(k)
    y = jnp.dot(x_ref[...], w_ref[...],
                preferred_element_type=jnp.float32) + b_ref[...]

    v = y[:, :d_k]                          # (rows, d_k)
    sq = y[:, d_k:d_k + 1]                  # (rows, 1)
    sk = y[:, d_k + 1:d_k + 2]              # (rows, 1)
    score = sq * sk                         # (rows, 1) scaled logits

    # Segment (= batch) membership mask, built without integer division:
    # in_seg[r, s] = (s*c <= r < (s+1)*c)
    row_i = jax.lax.broadcasted_iota(jnp.int32, (rows, g), 0)
    seg_lo = jax.lax.broadcasted_iota(jnp.int32, (rows, g), 1) * c
    d = row_i - seg_lo
    in_seg = jnp.logical_and(d >= 0, d < c)          # (rows, g) bool
    seg_f = in_seg.astype(jnp.float32)               # 0/1 mask

    # Per-segment softmax over the c rows of each batch, exponentiating only
    # the (rows, 1) column.  Python-literal sentinel (not a captured array);
    # it is only an argument to max(), never exp().
    masked = jnp.where(in_seg, score, -1e30)                     # (rows, g)
    seg_max = jnp.max(masked, axis=0, keepdims=True)             # (1, g)
    row_max = jnp.sum(seg_f * seg_max, axis=1, keepdims=True)    # (rows, 1)
    e = jnp.exp(score - row_max)                                 # (rows, 1)
    seg_sum = jnp.sum(seg_f * e, axis=0, keepdims=True)          # (1, g)
    row_sum = jnp.sum(seg_f * seg_sum, axis=1, keepdims=True)    # (rows, 1)
    p = e / row_sum                                              # exact divide

    o_ref[...] = (v * p).astype(o_ref.dtype)


def _choose_batches_per_block(n, c, d_m, d_k, x_itemsize,
                              vmem_budget_bytes=16 * 1024 * 1024):
    """Largest number of whole batches per block that (a) divides n,
    (b) keeps the block row-count a multiple of 8 (sublane rule) unless it is
    the full array, and (c) keeps the double-buffered working set within the
    VMEM budget."""
    per_batch = c * (d_m * x_itemsize + d_k * 4)      # x block + out block
    cap = max(1, int(vmem_budget_bytes // (4 * per_batch)))
    g = min(n, cap)
    while g >= 1:
        if n % g == 0 and ((g * c) % 8 == 0 or g == n):
            return g
        g -= 1
    return n  # fallback: single full-array block (always a legal block shape)


def self_attention_pallas(x, wq, bq, wk, bk, wv, bv, *,
                          matmul_dtype=jnp.bfloat16,
                          batches_per_block=None):
    """x: (N, C, d_m); Linear weights stored pre-transposed as (d_m, d_k)."""
    N, C, d_m = x.shape
    d_k = wv.shape[1]
    inv_sqrt_dk = 1.0 / jnp.sqrt(jnp.float32(d_k))

    # rowsum(x @ Wq + bq) == x @ Wq.sum(axis=1) + bq.sum()  (exact identity);
    # fold 1/sqrt(d_k) into the Q column-sum.  Column-sums are computed in f32
    # and only then cast to the matmul dtype.
    wq_col = wq.sum(axis=1, keepdims=True) * inv_sqrt_dk          # (d_m, 1)
    wk_col = wk.sum(axis=1, keepdims=True)                        # (d_m, 1)
    w_fused = jnp.concatenate([wv, wq_col, wk_col], axis=1)       # (d_m, d_k+2)
    w_fused = w_fused.astype(matmul_dtype)
    extra_b = jnp.stack([bq.sum() * inv_sqrt_dk, bk.sum()])       # (2,)
    b_fused = jnp.concatenate([bv, extra_b]).reshape(1, d_k + 2)
    b_fused = b_fused.astype(jnp.float32)

    x2d = x.reshape(N * C, d_m).astype(matmul_dtype)

    if batches_per_block is None:
        g = _choose_batches_per_block(N, C, d_m, d_k,
                                      jnp.dtype(matmul_dtype).itemsize)
    else:
        g = int(batches_per_block)
    assert N % g == 0, "batches_per_block must divide the batch dimension"
    rows = g * C

    kernel = functools.partial(_self_attn_kernel, g=g, c=C, d_k=d_k)

    out2d = pl.pallas_call(
        kernel,
        out_shape=jax.ShapeDtypeStruct((N * C, d_k), x.dtype),
        grid_spec=pltpu.PrefetchScalarGridSpec(
            num_scalar_prefetch=0,
            grid=(N // g,),
            in_specs=[
                pl.BlockSpec((rows, d_m), lambda i: (i, 0)),        # x block
                pl.BlockSpec((d_m, d_k + 2), lambda i: (0, 0)),     # fused W
                pl.BlockSpec((1, d_k + 2), lambda i: (0, 0)),       # fused b
            ],
            out_specs=pl.BlockSpec((rows, d_k), lambda i: (i, 0)),
        ),
        compiler_params=pltpu.CompilerParams(
            dimension_semantics=("parallel",),          # megacore split on v7x
            vmem_limit_bytes=32 * 1024 * 1024,          # > v5e 16 MiB default,
        ),                                              # < v7x 64 MiB physical
    )(x2d, w_fused, b_fused)

    return out2d.reshape(N, C, d_k)


def self_attention_ref(x, wq, bq, wk, bk, wv, bv, d_k):
    """Pure-JAX reference with the original PyTorch semantics (f32)."""
    q = x @ wq + bq
    k = x @ wk + bk
    v = x @ wv + bv
    score = jnp.einsum('nci,ncj->nc', q, k) / jnp.sqrt(jnp.float32(d_k))
    score = jax.nn.softmax(score, axis=-1)
    return v * score[:, :, None]


if __name__ == "__main__":
    N, C, d_m, d_k = 2, 8, 32, 16

    key = jax.random.PRNGKey(0)
    kx, kq, kbq, kk, kbk, kv, kbv = jax.random.split(key, 7)

    x = jax.random.normal(kx, (N, C, d_m), dtype=jnp.float32)
    # nn.Linear(d_m, d_k): weight (d_k, d_m), bias (d_k,).  Stored here
    # pre-transposed as (d_m, d_k) with the standard uniform init bound.
    bound = 1.0 / (float(d_m) ** 0.5)
    wq = jax.random.uniform(kq, (d_m, d_k), jnp.float32, -bound, bound)
    bq = jax.random.uniform(kbq, (d_k,), jnp.float32, -bound, bound)
    wk = jax.random.uniform(kk, (d_m, d_k), jnp.float32, -bound, bound)
    bk = jax.random.uniform(kbk, (d_k,), jnp.float32, -bound, bound)
    wv = jax.random.uniform(kv, (d_m, d_k), jnp.float32, -bound, bound)
    bv = jax.random.uniform(kbv, (d_k,), jnp.float32, -bound, bound)

    ref = self_attention_ref(x, wq, bq, wk, bk, wv, bv, d_k)

    # (1) f32 MXU path, forced 2-step grid (1 batch per block): exercises the
    #     blocked index_map and per-block segment softmax.  Tolerance covers
    #     default-precision f32 matmuls (MXU bf16 passes) and the column-sum
    #     summation-order change; any logic error would be O(1) off.
    out_f32 = self_attention_pallas(x, wq, bq, wk, bk, wv, bv,
                                    matmul_dtype=jnp.float32,
                                    batches_per_block=1)
    out_f32 = jax.block_until_ready(out_f32)
    assert out_f32.shape == (N, C, d_k)
    assert jnp.allclose(out_f32, ref, atol=1e-2, rtol=1e-2), \
        "f32 path mismatch vs reference"

    # (2) Default bf16-MXU path (halves x HBM traffic; f32 accumulate/softmax).
    #     Tolerance reflects bf16 quantization of the matmul inputs feeding a
    #     softmax; the underlying math is identical.
    out = self_attention_pallas(x, wq, bq, wk, bk, wv, bv)
    out = jax.block_until_ready(out)
    assert out.shape == (N, C, d_k)
    assert jnp.allclose(out, ref, atol=5e-2, rtol=5e-2), \
        "bf16 path mismatch vs reference"

    print("KERNEL_OK")
</pallas_src>

<mosaic_0001>
module attributes {stable_mosaic.version = 11 : i64} {
  func.func @_self_attn_kernel(%arg0: i32, %arg1: memref<8x32xf32, #tpu.memory_space<vmem>>, %arg2: memref<32x18xf32, #tpu.memory_space<vmem>>, %arg3: memref<1x18xf32, #tpu.memory_space<vmem>>, %arg4: memref<8x16xf32, #tpu.memory_space<vmem>>) attributes {dimension_semantics = [#tpu.dimension_semantics<parallel>], iteration_bounds = array<i64: 2>, scalar_prefetch = 0 : i64, scratch_operands = 0 : i64, tpu.core_type = #tpu.core_type<tc>, window_params = [{transform_indices = @transform_0, window_bounds = array<i64: 8, 32>}, {pipeline_mode = #tpu.pipeline_mode<synchronous>, transform_indices = @transform_1, window_bounds = array<i64: 32, 18>}, {pipeline_mode = #tpu.pipeline_mode<synchronous>, transform_indices = @transform_2, window_bounds = array<i64: 1, 18>}, {transform_indices = @transform_3, window_bounds = array<i64: 8, 16>}]} {
    %c0 = arith.constant 0 : index
    %c0_0 = arith.constant 0 : index
    %0 = vector.load %arg1[%c0, %c0_0] : memref<8x32xf32, #tpu.memory_space<vmem>>, vector<8x32xf32>
    %c0_1 = arith.constant 0 : index
    %c0_2 = arith.constant 0 : index
    %1 = vector.load %arg2[%c0_1, %c0_2] : memref<32x18xf32, #tpu.memory_space<vmem>>, vector<32x18xf32>
    %cst = arith.constant dense<0.000000e+00> : vector<8x18xf32>
    %2 = tpu.matmul %0, %1, %cst {dimension_numbers = #tpu.dot_dimension_numbers<[1], [0], [0], [1], [0, 0, 1, 1], [], []>} : vector<8x32xf32>, vector<32x18xf32>, vector<8x18xf32> -> vector<8x18xf32>
    %c0_3 = arith.constant 0 : index
    %c0_4 = arith.constant 0 : index
    %3 = vector.load %arg3[%c0_3, %c0_4] : memref<1x18xf32, #tpu.memory_space<vmem>>, vector<1x18xf32>
    %4 = vector.broadcast %3 : vector<1x18xf32> to vector<8x18xf32>
    %5 = arith.addf %2, %4 : vector<8x18xf32>
    %6 = vector.extract_strided_slice %5 {offsets = [0, 0], sizes = [8, 16], strides = [1, 1]} : vector<8x18xf32> to vector<8x16xf32>
    %7 = vector.extract_strided_slice %5 {offsets = [0, 16], sizes = [8, 1], strides = [1, 1]} : vector<8x18xf32> to vector<8x1xf32>
    %8 = vector.extract_strided_slice %5 {offsets = [0, 17], sizes = [8, 1], strides = [1, 1]} : vector<8x18xf32> to vector<8x1xf32>
    %9 = arith.mulf %7, %8 : vector<8x1xf32>
    %10 = tpu.iota {dimensions = array<i32: 0>} : vector<8x1xi32>
    %11 = tpu.iota {dimensions = array<i32: 1>} : vector<8x1xi32>
    %c8_i32 = arith.constant 8 : i32
    %12 = vector.broadcast %c8_i32 : i32 to vector<8x1xi32>
    %13 = arith.muli %11, %12 : vector<8x1xi32>
    %14 = arith.subi %10, %13 : vector<8x1xi32>
    %c0_i32 = arith.constant 0 : i32
    %15 = vector.broadcast %c0_i32 : i32 to vector<8x1xi32>
    %16 = arith.cmpi sge, %14, %15 : vector<8x1xi32>
    %c8_i32_5 = arith.constant 8 : i32
    %17 = vector.broadcast %c8_i32_5 : i32 to vector<8x1xi32>
    %18 = arith.cmpi slt, %14, %17 : vector<8x1xi32>
    %19 = arith.andi %16, %18 : vector<8x1xi1>
    %20 = arith.extui %19 : vector<8x1xi1> to vector<8x1xi32>
    %21 = arith.sitofp %20 : vector<8x1xi32> to vector<8x1xf32>
    %cst_6 = arith.constant -1.000000e+30 : f32
    %22 = vector.broadcast %cst_6 : f32 to vector<8x1xf32>
    %23 = arith.select %19, %9, %22 : vector<8x1xi1>, vector<8x1xf32>
    %cst_7 = arith.constant dense<0xFF800000> : vector<1xf32>
    %24 = vector.multi_reduction <maximumf>, %23, %cst_7 [0] : vector<8x1xf32> to vector<1xf32>
    %25 = vector.shape_cast %24 : vector<1xf32> to vector<1x1xf32>
    %26 = vector.broadcast %25 : vector<1x1xf32> to vector<8x1xf32>
    %27 = arith.mulf %21, %26 : vector<8x1xf32>
    %cst_8 = arith.constant dense<0.000000e+00> : vector<8xf32>
    %28 = vector.multi_reduction <add>, %27, %cst_8 [1] : vector<8x1xf32> to vector<8xf32>
    %29 = vector.shape_cast %28 : vector<8xf32> to vector<8x1xf32>
    %30 = arith.subf %9, %29 : vector<8x1xf32>
    %31 = math.exp %30 : vector<8x1xf32>
    %32 = arith.mulf %21, %31 : vector<8x1xf32>
    %cst_9 = arith.constant dense<0.000000e+00> : vector<1xf32>
    %33 = vector.multi_reduction <add>, %32, %cst_9 [0] : vector<8x1xf32> to vector<1xf32>
    %34 = vector.shape_cast %33 : vector<1xf32> to vector<1x1xf32>
    %35 = vector.broadcast %34 : vector<1x1xf32> to vector<8x1xf32>
    %36 = arith.mulf %21, %35 : vector<8x1xf32>
    %cst_10 = arith.constant dense<0.000000e+00> : vector<8xf32>
    %37 = vector.multi_reduction <add>, %36, %cst_10 [1] : vector<8x1xf32> to vector<8xf32>
    %38 = vector.shape_cast %37 : vector<8xf32> to vector<8x1xf32>
    %39 = arith.divf %31, %38 : vector<8x1xf32>
    %40 = vector.broadcast %39 : vector<8x1xf32> to vector<8x16xf32>
    %41 = arith.mulf %6, %40 : vector<8x16xf32>
    %c0_11 = arith.constant 0 : index
    %c0_12 = arith.constant 0 : index
    %42 = vector.load %arg4[%c0_11, %c0_12] : memref<8x16xf32, #tpu.memory_space<vmem>>, vector<8x16xf32>
    tpu.vector_store %arg4[%c0_11, %c0_12], %41 {strides = array<i32>} : memref<8x16xf32, #tpu.memory_space<vmem>>, vector<8x16xf32>,
    return
  }
  func.func @transform_0(%arg0: i32) -> (i32, i32) {
    %c0_i32 = arith.constant 0 : i32
    %c0_i32_0 = arith.constant 0 : i32
    return %arg0, %c0_i32 : i32, i32
  }
  func.func @transform_1(%arg0: i32) -> (i32, i32) {
    %c0_i32 = arith.constant 0 : i32
    %c0_i32_0 = arith.constant 0 : i32
    %c0_i32_1 = arith.constant 0 : i32
    return %c0_i32, %c0_i32_0 : i32, i32
  }
  func.func @transform_2(%arg0: i32) -> (i32, i32) {
    %c0_i32 = arith.constant 0 : i32
    %c0_i32_0 = arith.constant 0 : i32
    %c0_i32_1 = arith.constant 0 : i32
    return %c0_i32, %c0_i32_0 : i32, i32
  }
  func.func @transform_3(%arg0: i32) -> (i32, i32) {
    %c0_i32 = arith.constant 0 : i32
    %c0_i32_0 = arith.constant 0 : i32
    return %arg0, %c0_i32 : i32, i32
  }
}

</mosaic_0001>

<llo_original>
// kernel: tpu_custom_call.1
$region0: #{tpu_custom_call.1}
  #allocation0 [shape = 'u32[]', space=smem, size = 0x4, offset = 0x4, fixed_abs, tag = 'smem constant byte address 0x4 - core index']
  #allocation1 [shape = 'u32[144,128]{1,0:T(1,128)}', space=vmem, size = 0x12000, scoped, tag = 'internal scratch']
  %s0 = inlined_call_operand.vmem [shape: f32[16,32], index: 0, kind: input, shape index: {}]
  %s1 = inlined_call_operand.vmem [shape: f32[32,18], index: 1, kind: input, shape index: {}]
  %s2 = inlined_call_operand.vmem [shape: f32[1,18], index: 2, kind: input, shape index: {}]
  %s3 = inlined_call_operand.hbm [shape: f32[16,16], index: 3, kind: output, shape index: {}]
  %s4 = sld [smem:[#allocation0]]
  $region45: #{tpu_custom_call.1} parent=0
    _
  %s6 = ssub.s32 1, %s4
  %s7 = scalar_select 0, %s6, %s4
  $region1: #{tpu_custom_call.1} parent=0
    #allocation2 [shape = 'u8[8192]{0}', space=vmem, size = 0x2000, scoped, tag = 'output window, operand 0']
    #allocation3 [shape = 's32[2]{0}', space=sflag, size = 0x8, scoped, tag = 'scoped memory for tpu_custom_call.1']
    %8 = vsyncpa [#allocation3], 0
    %s9 = scalar_lea.sflag [#allocation3], 1
    %10 = vsyncpa %s9, 0
    loop: start=0, step=1, limit=4
    $region2: #{tpu_custom_call.1} parent=1 // loop_pre_header
      _
    $region3: #{tpu_custom_call.1} parent=1 // loop_header
      %s12 = sphi 0, %s16
      %p13 = scmp.ge.s32.totalorder %s12, 4
      %s22 = sphi 0, %s24
      %s25 = sphi 0, %s22
      %s26 = sphi 0, %s25
      %s42 = sphi 0, %s26
      %s46 = sphi 0, %s46
      %s48 = sphi 0, %s46
      %s49 = sphi 0, %s48
      %s63 = sphi 0, %s49
      %s67 = sphi 0, %s67
      %s69 = sphi 0, %s67
      %s70 = sphi 0, %s69
      %s84 = sphi 0, %s70
      %s90 = sphi 0, %s92
      %s93 = sphi 0, %s90
      %s94 = sphi 0, %s93
      %s110 = sphi 0, %s94
    $region4: #{tpu_custom_call.1} parent=1 // loop_header_branch
      %15 = sbr.rel (%p13) target = $region8
    $region5: #{tpu_custom_call.1} parent=1 // loop_body
      %s17 = ssub.s32 %s12, 1
      %s18 = ssub.s32 %s12, 2
      %s19 = sadd.s32 %s12, 1
      %s20 = ssub.s32 %s12, %s19
      %p21 = scmp.eq.s32.totalorder %s20, 0
      %s23 = sadd.s32 %s22, 1
      %s24 = scalar_select %p21, %s22, %s23
      %p27 = pneg %p21
      %p28 = scmp.eq.s32.totalorder %s12, 1
      %p29 = por %p27, %p28
      %p30 = scmp.ne.s32.totalorder %s22, %s25
      %p31 = scmp.eq.s32.totalorder %s12, 0
      %p32 = por %p30, %p31
      %p33 = scmp.ne.s32.totalorder %s22, %s25
      %p34 = scmp.eq.s32.totalorder %s17, 1
      %p35 = por %p33, %p34
      %p36 = scmp.ne.s32.totalorder %s25, %s26
      %p37 = scmp.eq.s32.totalorder %s17, 0
      %p38 = por %p36, %p37
      %p39 = scmp.ne.s32.totalorder %s25, %s26
      %p40 = scmp.eq.s32.totalorder %s18, 1
      %p41 = por %p39, %p40
      %p43 = scmp.ne.s32.totalorder %s26, %s42
      %p44 = scmp.eq.s32.totalorder %s18, 0
      %p45 = por %p43, %p44
      %s47 = sadd.s32 %s46, 1
      %p50 = scmp.eq.s32.totalorder %s12, 1
      %p51 = scmp.ne.s32.totalorder %s46, %s48
      %p52 = scmp.eq.s32.totalorder %s12, 0
      %p53 = por %p51, %p52
      %p54 = scmp.ne.s32.totalorder %s46, %s48
      %p55 = scmp.eq.s32.totalorder %s17, 1
      %p56 = por %p54, %p55
      %p57 = scmp.ne.s32.totalorder %s48, %s49
      %p58 = scmp.eq.s32.totalorder %s17, 0
      %p59 = por %p57, %p58
      %p60 = scmp.ne.s32.totalorder %s48, %s49
      %p61 = scmp.eq.s32.totalorder %s18, 1
      %p62 = por %p60, %p61
      %p64 = scmp.ne.s32.totalorder %s49, %s63
      %p65 = scmp.eq.s32.totalorder %s18, 0
      %p66 = por %p64, %p65
      %s68 = sadd.s32 %s67, 1
      %p71 = scmp.eq.s32.totalorder %s12, 1
      %p72 = scmp.ne.s32.totalorder %s67, %s69
      %p73 = scmp.eq.s32.totalorder %s12, 0
      %p74 = por %p72, %p73
      %p75 = scmp.ne.s32.totalorder %s67, %s69
      %p76 = scmp.eq.s32.totalorder %s17, 1
      %p77 = por %p75, %p76
      %p78 = scmp.ne.s32.totalorder %s69, %s70
      %p79 = scmp.eq.s32.totalorder %s17, 0
      %p80 = por %p78, %p79
      %p81 = scmp.ne.s32.totalorder %s69, %s70
      %p82 = scmp.eq.s32.totalorder %s18, 1
      %p83 = por %p81, %p82
      %p85 = scmp.ne.s32.totalorder %s70, %s84
      %p86 = scmp.eq.s32.totalorder %s18, 0
      %p87 = por %p85, %p86
      %s88 = ssub.s32 %s12, %s19
      %p89 = scmp.eq.s32.totalorder %s88, 0
      %s91 = sadd.s32 %s90, 1
      %s92 = scalar_select %p89, %s90, %s91
      %p95 = pneg %p89
      %p96 = scmp.eq.s32.totalorder %s12, 1
      %p97 = por %p95, %p96
      %p98 = scmp.ne.s32.totalorder %s90, %s93
      %p99 = scmp.eq.s32.totalorder %s12, 0
      %p100 = por %p98, %p99
      %p101 = scmp.ne.s32.totalorder %s90, %s93
      %p102 = scmp.eq.s32.totalorder %s17, 1
      %p103 = por %p101, %p102
      %p104 = scmp.ne.s32.totalorder %s93, %s94
      %p105 = scmp.eq.s32.totalorder %s17, 0
      %p106 = por %p104, %p105
      %p107 = scmp.ne.s32.totalorder %s93, %s94
      %p108 = scmp.eq.s32.totalorder %s18, 1
      %p109 = por %p107, %p108
      %p111 = scmp.ne.s32.totalorder %s94, %s110
      %p112 = scmp.eq.s32.totalorder %s18, 0
      %p113 = por %p111, %p112
      %p114 = scmp.le.s32.totalorder 1, %s12
      %p115 = scmp.lt.s32.totalorder %s12, 3
      %p116 = pnand %p114, %p115
      %p117 = pneg %p116
      // Predicated region
      $region9: #{tpu_custom_call.1} parent=5 // pred_check
        _
      $region10: #{tpu_custom_call.1} parent=5 // pred_check_branch
        %119 = sbr.rel (%p116) target = $region12
      $region11: #{tpu_custom_call.1} parent=5 // pred_region
        %s120 = ssub.s32 %s12, 1
        // Predicated region
        $region13: #{tpu_custom_call.1} parent=11 // pred_check
          %p121 = pneg %p59
        $region14: #{tpu_custom_call.1} parent=11 // pred_check_branch
          %123 = sbr.rel (%p121) target = $region16
        $region15: #{tpu_custom_call.1} parent=11 // pred_region
          _
        $region16: #{tpu_custom_call.1} parent=11 // pred_fallthru
          _
        // Predicated region
        $region17: #{tpu_custom_call.1} parent=11 // pred_check
          %p124 = pneg %p80
        $region18: #{tpu_custom_call.1} parent=11 // pred_check_branch
          %126 = sbr.rel (%p124) target = $region20
        $region19: #{tpu_custom_call.1} parent=11 // pred_region
          _
        $region20: #{tpu_custom_call.1} parent=11 // pred_fallthru
          _
      $region12: #{tpu_custom_call.1} parent=5 // pred_fallthru
        _
      %p127 = scmp.lt.s32.totalorder %s12, 2
      // Predicated region
      $region21: #{tpu_custom_call.1} parent=5 // pred_check
        %p128 = pneg %p127
      $region22: #{tpu_custom_call.1} parent=5 // pred_check_branch
        %130 = sbr.rel (%p128) target = $region24
      $region23: #{tpu_custom_call.1} parent=5 // pred_region
        // Predicated region
        $region25: #{tpu_custom_call.1} parent=23 // pred_check
          %p131 = pneg %p32
        $region26: #{tpu_custom_call.1} parent=23 // pred_check_branch
          %133 = sbr.rel (%p131) target = $region28
        $region27: #{tpu_custom_call.1} parent=23 // pred_region
          %p134 = scmp.lt.s32.totalorder %s12, 1
          %s135 = scalar_select %p134, %s12, 1
          %s136 = smul.addr %s135, 8
          %s137 = scalar_lea.vmem %s0, %s136
        $region28: #{tpu_custom_call.1} parent=23 // pred_fallthru
          _
      $region24: #{tpu_custom_call.1} parent=5 // pred_fallthru
        _
      %p138 = scmp.le.s32.totalorder 1, %s12
      %p139 = scmp.lt.s32.totalorder %s12, 3
      %p140 = pnand %p138, %p139
      %p141 = pneg %p140
      // Predicated region
      $region29: #{tpu_custom_call.1} parent=5 // pred_check
        _
      $region30: #{tpu_custom_call.1} parent=5 // pred_check_branch
        %143 = sbr.rel (%p140) target = $region32
      $region31: #{tpu_custom_call.1} parent=5 // pred_region
        %s144 = ssub.s32 %s12, 1
        %p145 = scmp.lt.s32.totalorder %s17, 1
        %s146 = scalar_select %p145, %s17, 1
        %s147 = smul.addr %s146, 8
        %s148 = scalar_lea.vmem %s0, %s147
        %p149 = pneg %p38
        %p150 = pneg %p35
        %p151 = pneg %p59
        %p152 = pneg %p56
        %p153 = pneg %p80
        %p154 = pneg %p77
        %p155 = pneg %p106
        %p156 = pneg %p103
        %s157 = sand.u32 %s93, 1
        %s158 = scalar_lea.sflag [#allocation3], %s157
        %s159 = sand.u32 %s93, 1
        %s160 = smul.addr %s159, 8
        %s161 = scalar_lea.vmem [#allocation2], %s160
        %p162 = scmp.lt.s32.totalorder %s17, 1
        %s163 = scalar_select %p162, %s17, 1
        %s164 = smul.addr %s163, 8
        %s165 = scalar_lea.vmem %s0, %s164
        %v166 = vld [vmem:[%s165] sm:$0xff]
        %v167 = vld [vmem:[%s1] sm:$0xff]
        %v168 = vld [vmem:[%s1 + $0x8] sm:$0xff]
        %v169 = vld [vmem:[%s1 + $0x10] sm:$0xff]
        %v170 = vld [vmem:[%s1 + $0x18] sm:$0xff]
        %v171 = vld [vmem:[%s2] sm:$0x1]
        %v173 = vlaneseq
        %v174 = vshrl.u32 %v173, 7
        %v175 = vsub.s32 0, %v174
        %v176 = vrot.slane %v171, %v175
        %vm178 = vcmask 261120
        %v180 = vsel %vm178, %v166, 0
        %182 = vmatprep.subr.mxu0 0.0
        %183 = vmatpush1.msra.mxu0 %v167
        %184 = vmatprep.subr.mxu0 0.0
        %185 = vmatpush1.msra.mxu0 %v168
        %186 = vmatprep.subr.mxu0 0.0
        %187 = vmatpush1.msra.mxu0 %v169
        %188 = vmatprep.subr.mxu0 0.0
        %189 = vmatpush1.msra.mxu0 %v170
        %190 = vmatprep.subr.mxu0 0.0
        %191 = vmatpush1.msra.mxu0 0.0
        %192 = vmatprep.subr.mxu0 0.0
        %193 = vmatpush1.msra.mxu0 0.0
        %194 = vmatprep.subr.mxu0 0.0
        %195 = vmatpush1.msra.mxu0 0.0
        %196 = vmatprep.subr.mxu0 0.0
        %197 = vmatpush1.msra.mxu0 0.0
        %198 = vmatprep.subr.mxu0 0.0
        %199 = vmatpush1.msra.mxu0 0.0
        %200 = vmatprep.subr.mxu0 0.0
        %201 = vmatpush1.msra.mxu0 0.0
        %202 = vmatprep.subr.mxu0 0.0
        %203 = vmatpush1.msra.mxu0 0.0
        %204 = vmatprep.subr.mxu0 0.0
        %205 = vmatpush1.msra.mxu0 0.0
        %206 = vmatprep.subr.mxu0 0.0
        %207 = vmatpush1.msra.mxu0 0.0
        %208 = vmatprep.subr.mxu0 0.0
        %209 = vmatpush1.msra.mxu0 0.0
        %210 = vmatprep.subr.mxu0 0.0
        %211 = vmatpush1.msra.mxu0 0.0
        %212 = vmatprep.subr.mxu0 0.0
        %213 = vmatpush1.msra.mxu0 0.0
        %214 = vmatprep.subr.mxu0 0.0
        %215 = vmatpush1.msra.mxu0 0.0
        %216 = vmatprep.subr.mxu0 0.0
        %217 = vmatpush1.msra.mxu0 0.0
        %218 = vmatprep.subr.mxu0 0.0
        %219 = vmatpush1.msra.mxu0 0.0
        %220 = vmatprep.subr.mxu0 0.0
        %221 = vmatpush1.msra.mxu0 0.0
        %222 = vmatprep.subr.mxu0 0.0
        %223 = vmatpush1.msra.mxu0 0.0
        %224 = vmatprep.subr.mxu0 0.0
        %225 = vmatpush1.msra.mxu0 0.0
        %226 = vmatprep.subr.mxu0 0.0
        %227 = vmatpush1.msra.mxu0 0.0
        %228 = vmatprep.subr.mxu0 0.0
        %229 = vmatpush1.msra.mxu0 0.0
        %230 = vmatprep.subr.mxu0 0.0
        %231 = vmatpush1.msra.mxu0 0.0
        %232 = vmatprep.subr.mxu0 0.0
        %233 = vmatpush1.msra.mxu0 0.0
        %234 = vmatprep.subr.mxu0 0.0
        %235 = vmatpush1.msra.mxu0 0.0
        %236 = vmatprep.subr.mxu0 0.0
        %237 = vmatpush1.msra.mxu0 0.0
        %238 = vmatprep.subr.mxu0 0.0
        %239 = vmatpush1.msra.mxu0 0.0
        %240 = vmatprep.subr.mxu0 0.0
        %241 = vmatpush1.msra.mxu0 0.0
        %242 = vmatprep.subr.mxu0 0.0
        %243 = vmatpush1.msra.mxu0 0.0
        %244 = vmatprep.subr.mxu0 0.0
        %245 = vmatpush1.msra.mxu0 0.0
        %246 = vmatprep.mubr.f32.mxu0 0.0
        %247 = vmatmul.mubr.f32.gmra.mrb[0].mxu0 %v180
        %v248 = vpop.f32.mrb[0].mxu0
        %v249 = vadd.f32 %v176, %v248
        %v250 = vpop.f32.mrb[0].mxu0
        %251 = vdwg.mxu0
        %253 = vrot.lane.b32.xlu0 %v249, 127
        %v254 = vpop.permute.xlu0 %253
        %v256 = vmul.f32 %v249, %v254
        %v257 = vlaneseq
        %v258 = vshrl.u32 %v257, 7
        %v259 = vlaneseq
        %v260 = vand.u32 %v259, 127
        %v261 = vmul.u32 %v260, 8
        %v262 = vsub.s32 %v258, %v261
        %vm263 = vcmp.ge.s32.totalorder %v262, 0
        %vm264 = vcmp.lt.s32.totalorder %v262, 8
        %vm265 = vmand %vm263, %vm264
        %v266 = vsel %vm265, 1, 0
        %v267 = vcvt.s32.f32 %v266
        %269 = vrot.lane.b32.xlu0 %v256, 112
        %v270 = vpop.permute.xlu0 %269
        %v272 = vsel %vm265, %v270, -1e+30
        %vm273 = vcmask 7168
        %v274 = vsel %vm273, %v272, -inf
        %v275 = vrot.slane %v274, 4
        %v276 = vmax.f32 %v274, %v275
        %v277 = vrot.slane %v276, 2
        %v278 = vmax.f32 %v276, %v277
        %v279 = vrot.slane %v278, 1
        %v280 = vmax.f32 %v278, %v279
        %v281 = vmul.f32 %v267, %v280
        %v282 = vadd.f32 %v281, 0.0
        %284 = vrot.lane.b32.xlu0 %v282, 16
        %v285 = vpop.permute.xlu0 %284
        %v287 = vsub.f32 %v256, %v285
        %v288 = vmul.f32 %v287, 1.442695
        %v289 = vpow.pop %v288
        %291 = vrot.lane.b32.xlu0 %v289, 112
        %v292 = vpop.permute.xlu0 %291
        %v294 = vmul.f32 %v267, %v292
        %v295 = vsel %vm273, %v294, 0.0
        %v296 = vrot.slane %v295, 4
        %v297 = vadd.f32 %v295, %v296
        %v298 = vrot.slane %v297, 2
        %v299 = vadd.f32 %v297, %v298
        %v300 = vrot.slane %v299, 1
        %v301 = vadd.f32 %v299, %v300
        %v302 = vmul.f32 %v267, %v301
        %v303 = vadd.f32 %v302, 0.0
        %305 = vrot.lane.b32.xlu0 %v303, 16
        %v306 = vpop.permute.xlu0 %305
        %v308 = vrcp.pop %v306
        %v309 = vmul.f32 %v289, %v308
        %311 = vset.pattern.permute.xlu0 16
        %312 = vperm.xlu0 %311, %v309
        %v313 = vpop.permute.xlu0 %312
        %v315 = vmul.f32 %v249, %v313
        %vm316 = vcmask 130048
        %317 = vst.msk [vmem:[%s161] sm:$0xff] %vm316, %v315
        %s318 = sand.u32 %s93, 1
        %s319 = scalar_lea.sflag [#allocation3], %s318
        %s320 = sand.u32 %s93, 1
        %s321 = smul.addr %s320, 8
        %s322 = scalar_lea.vmem [#allocation2], %s321
        // Predicated region
        $region33: #{tpu_custom_call.1} parent=31 // pred_check
          %p323 = pneg %p103
        $region34: #{tpu_custom_call.1} parent=31 // pred_check_branch
          %325 = sbr.rel (%p323) target = $region36
        $region35: #{tpu_custom_call.1} parent=31 // pred_region
          %s327 = ssub.s32 128, 128
          %328 = vsyncadd %s319, %s327
          %s329 = smul.addr %s17, 128
          %s330 = scalar_lea.hbm %s3, %s329
          %s332 = sshll.u32 %s322, 4
          %s333 = int_to_ptr.vmem [resolvable:$true] %s332
          %335 = dma.vmem_to_hbm [thread:$0]  %s333, 128, %s330, %s319
        $region36: #{tpu_custom_call.1} parent=31 // pred_fallthru
          _
      $region32: #{tpu_custom_call.1} parent=5 // pred_fallthru
        _
      %p336 = scmp.le.s32.totalorder 2, %s12
      // Predicated region
      $region37: #{tpu_custom_call.1} parent=5 // pred_check
        %p337 = pneg %p336
      $region38: #{tpu_custom_call.1} parent=5 // pred_check_branch
        %339 = sbr.rel (%p337) target = $region40
      $region39: #{tpu_custom_call.1} parent=5 // pred_region
        %s340 = ssub.s32 %s12, 2
        // Predicated region
        $region41: #{tpu_custom_call.1} parent=39 // pred_check
          %p341 = pneg %p109
        $region42: #{tpu_custom_call.1} parent=39 // pred_check_branch
          %343 = sbr.rel (%p341) target = $region44
        $region43: #{tpu_custom_call.1} parent=39 // pred_region
          %s344 = sand.u32 %s94, 1
          %s345 = scalar_lea.sflag [#allocation3], %s344
          %s346 = sand.u32 %s94, 1
          %s347 = smul.addr %s346, 8
          %s348 = scalar_lea.vmem [#allocation2], %s347
          %349 = dma.done %s345, 128
        $region44: #{tpu_custom_call.1} parent=39 // pred_fallthru
          _
      $region40: #{tpu_custom_call.1} parent=5 // pred_fallthru
        _
    $region6: #{tpu_custom_call.1} parent=1 // loop_footer
      %s16 = sadd.s32 1, %s12
    $region7: #{tpu_custom_call.1} parent=1 // loop_footer_branch
      %11 = sbr.rel target = $region3
    $region8: #{tpu_custom_call.1} parent=1 // loop_exit
      _
    %350 = vsyncpa [#allocation3], 1
    %s351 = scalar_lea.sflag [#allocation3], 1
    %352 = vsyncpa %s351, 1

</llo_original>
